<compile_context>
chip_gen: v7x
topology: tpu7x:2x2x1
jax: 0.10.0
libtpu: 0.0.40
codegen_flags: <defaults>
</compile_context>

<pallas_src>
import jax
import jax.numpy as jnp
from jax.experimental import pallas as pl
from jax.experimental.pallas import tpu as pltpu


def _residual_block_kernel(x_ref, m1_ref, b1_ref, m2_ref, b2_ref, o_ref):
    # x_ref  : (1, H, W*C)      input image, lanes = (w, c)
    # m*_ref : (3, W*C, W*C)    banded conv weights, one band per kernel row ky
    # b*_ref : (1, W*C)         bias tiled over w
    # o_ref  : (1, H, W*C)      output
    _, H, WC = x_ref.shape

    x = x_ref[0].astype(jnp.float32)                      # (H, WC)
    zrow = jnp.zeros((1, WC), jnp.float32)

    def conv3x3(inp, m_ref, b_ref):
        # zero rows for the height halo; width halo is encoded in the band.
        xp = jnp.concatenate([zrow, inp, zrow], axis=0)   # (H+2, WC)
        acc = jnp.zeros((H, WC), jnp.float32)
        for ky in range(3):                               # unrolled, 3 MXU matmuls
            acc += jnp.dot(xp[ky:ky + H, :],
                           m_ref[ky].astype(jnp.float32),
                           preferred_element_type=jnp.float32)
        return acc + b_ref[...].astype(jnp.float32)       # (H, WC) + (1, WC)

    y1 = jnp.maximum(conv3x3(x, m1_ref, b1_ref), 0.0)     # conv1 + ReLU
    y2 = conv3x3(y1, m2_ref, b2_ref)                      # conv2
    o_ref[0] = jnp.maximum(x + y2, 0.0).astype(o_ref.dtype)   # residual + ReLU


def _build_banded(wgt, W):
    """wgt: (3, 3, Cin, Cout) [kh, kw, Cin, Cout] -> (3, W*Cin, W*Cout) bands.

    band[ky][win*Cin + ci, wout*Cout + co] = wgt[ky, win - wout + 1, ci, co]
    when 0 <= win - wout + 1 <= 2, else 0 (this encodes the width zero-pad).
    """
    kh, kw, Cin, Cout = wgt.shape
    win = jnp.arange(W)[:, None]                          # (W, 1)
    wout = jnp.arange(W)[None, :]                         # (1, W)
    kx = win - wout + 1                                   # (W, W)
    valid = (kx >= 0) & (kx <= 2)
    kx_c = jnp.clip(kx, 0, 2)
    m = wgt[:, kx_c]                                      # (3, W, W, Cin, Cout)
    m = jnp.where(valid[None, :, :, None, None], m, 0.0)
    m = jnp.transpose(m, (0, 1, 3, 2, 4))                 # (3, W, Cin, W, Cout)
    return m.reshape(3, W * Cin, W * Cout)


def residual_block_pallas(x_nchw, w1, b1, w2, b2):
    """x_nchw: (B, C, H, W) f32.  w*: (3,3,C,C) [kh,kw,Cin,Cout], b*: (C,)."""
    B, C, H, W = x_nchw.shape
    WC = W * C

    # NCHW -> NHWC -> (B, H, W*C): lane axis carries (w, c).
    x = jnp.transpose(x_nchw, (0, 2, 3, 1)).reshape(B, H, WC)

    m1 = _build_banded(w1, W)                             # (3, WC, WC)
    m2 = _build_banded(w2, W)
    b1t = jnp.tile(b1, W).reshape(1, WC)                  # index w*C+c -> b[c]
    b2t = jnp.tile(b2, W).reshape(1, WC)

    out = pl.pallas_call(
        _residual_block_kernel,
        out_shape=jax.ShapeDtypeStruct((B, H, WC), x.dtype),
        grid_spec=pltpu.PrefetchScalarGridSpec(
            num_scalar_prefetch=0,
            grid=(B,),
            in_specs=[
                pl.BlockSpec((1, H, WC), lambda b: (b, 0, 0)),
                pl.BlockSpec((3, WC, WC), lambda b: (0, 0, 0)),
                pl.BlockSpec((1, WC), lambda b: (0, 0)),
                pl.BlockSpec((3, WC, WC), lambda b: (0, 0, 0)),
                pl.BlockSpec((1, WC), lambda b: (0, 0)),
            ],
            out_specs=pl.BlockSpec((1, H, WC), lambda b: (b, 0, 0)),
        ),
        compiler_params=pltpu.CompilerParams(
            dimension_semantics=("parallel",)),
    )(x, m1, b1t, m2, b2t)

    # (B, H, W*C) -> NHWC -> NCHW
    return jnp.transpose(out.reshape(B, H, W, C), (0, 3, 1, 2))


def _reference_jax(x_nchw, w1, b1, w2, b2):
    """Pure-JAX reference matching PyTorch Conv2d(kernel=3, padding=1)."""
    def conv(x, w, b):
        y = jax.lax.conv_general_dilated(
            x, jnp.transpose(w, (3, 2, 0, 1)),            # -> (Cout, Cin, kh, kw)
            window_strides=(1, 1), padding=((1, 1), (1, 1)),
            dimension_numbers=("NCHW", "OIHW", "NCHW"))
        return y + b.reshape(1, -1, 1, 1)
    y = jax.nn.relu(conv(x_nchw, w1, b1))
    y = conv(y, w2, b2)
    return jax.nn.relu(x_nchw + y)


if __name__ == "__main__":
    B, C, H, W = 2, 4, 16, 16
    key = jax.random.PRNGKey(0)
    kx, k1, kb1, k2, kb2 = jax.random.split(key, 5)

    x = jax.random.normal(kx, (B, C, H, W), jnp.float32)

    # Deterministic parameter init (fan_in = C*3*3, PyTorch-like scale).
    fan_in = C * 3 * 3
    scale = 1.0 / jnp.sqrt(fan_in)
    w1 = jax.random.uniform(k1, (3, 3, C, C), jnp.float32, -scale, scale)
    b1 = jax.random.uniform(kb1, (C,), jnp.float32, -scale, scale)
    w2 = jax.random.uniform(k2, (3, 3, C, C), jnp.float32, -scale, scale)
    b2 = jax.random.uniform(kb2, (C,), jnp.float32, -scale, scale)

    out = residual_block_pallas(x, w1, b1, w2, b2)
    out = jax.block_until_ready(out)

    ref = _reference_jax(x, w1, b1, w2, b2)
    assert out.shape == (B, C, H, W)
    assert jnp.max(jnp.abs(out - ref)) < 1e-4

    print("KERNEL_OK")
</pallas_src>

<mosaic_0001>
module attributes {stable_mosaic.version = 11 : i64} {
  func.func @_residual_block_kernel(%arg0: i32, %arg1: memref<1x16x64xf32, #tpu.memory_space<vmem>>, %arg2: memref<3x64x64xf32, #tpu.memory_space<vmem>>, %arg3: memref<1x64xf32, #tpu.memory_space<vmem>>, %arg4: memref<3x64x64xf32, #tpu.memory_space<vmem>>, %arg5: memref<1x64xf32, #tpu.memory_space<vmem>>, %arg6: memref<1x16x64xf32, #tpu.memory_space<vmem>>) attributes {dimension_semantics = [#tpu.dimension_semantics<parallel>], iteration_bounds = array<i64: 2>, scalar_prefetch = 0 : i64, scratch_operands = 0 : i64, tpu.core_type = #tpu.core_type<tc>, window_params = [{transform_indices = @transform_0, window_bounds = array<i64: 1, 16, 64>}, {pipeline_mode = #tpu.pipeline_mode<synchronous>, transform_indices = @transform_1, window_bounds = array<i64: 3, 64, 64>}, {pipeline_mode = #tpu.pipeline_mode<synchronous>, transform_indices = @transform_2, window_bounds = array<i64: 1, 64>}, {pipeline_mode = #tpu.pipeline_mode<synchronous>, transform_indices = @transform_3, window_bounds = array<i64: 3, 64, 64>}, {pipeline_mode = #tpu.pipeline_mode<synchronous>, transform_indices = @transform_4, window_bounds = array<i64: 1, 64>}, {transform_indices = @transform_5, window_bounds = array<i64: 1, 16, 64>}]} {
    %c0 = arith.constant 0 : index
    %c0_0 = arith.constant 0 : index
    %c0_1 = arith.constant 0 : index
    %0 = vector.load %arg1[%c0, %c0_0, %c0_1] : memref<1x16x64xf32, #tpu.memory_space<vmem>>, vector<1x16x64xf32>
    %1 = vector.shape_cast %0 : vector<1x16x64xf32> to vector<16x64xf32>
    %cst = arith.constant 0.000000e+00 : f32
    %2 = vector.broadcast %cst : f32 to vector<1x64xf32>
    %3 = tpu.concatenate %2, %1, %2 in 0 : vector<1x64xf32>, vector<16x64xf32>, vector<1x64xf32> -> vector<18x64xf32>
    %cst_2 = arith.constant 0.000000e+00 : f32
    %4 = vector.broadcast %cst_2 : f32 to vector<16x64xf32>
    %5 = vector.extract_strided_slice %3 {offsets = [0, 0], sizes = [16, 64], strides = [1, 1]} : vector<18x64xf32> to vector<16x64xf32>
    %c0_3 = arith.constant 0 : index
    %c0_4 = arith.constant 0 : index
    %c0_5 = arith.constant 0 : index
    %6 = vector.load %arg2[%c0_3, %c0_4, %c0_5] : memref<3x64x64xf32, #tpu.memory_space<vmem>>, vector<1x64x64xf32>
    %7 = vector.shape_cast %6 : vector<1x64x64xf32> to vector<64x64xf32>
    %cst_6 = arith.constant dense<0.000000e+00> : vector<16x64xf32>
    %8 = tpu.matmul %5, %7, %cst_6 {dimension_numbers = #tpu.dot_dimension_numbers<[1], [0], [0], [1], [0, 0, 1, 1], [], []>} : vector<16x64xf32>, vector<64x64xf32>, vector<16x64xf32> -> vector<16x64xf32>
    %9 = arith.addf %4, %8 : vector<16x64xf32>
    %10 = vector.extract_strided_slice %3 {offsets = [1, 0], sizes = [16, 64], strides = [1, 1]} : vector<18x64xf32> to vector<16x64xf32>
    %c1 = arith.constant 1 : index
    %c0_7 = arith.constant 0 : index
    %c0_8 = arith.constant 0 : index
    %11 = vector.load %arg2[%c1, %c0_7, %c0_8] : memref<3x64x64xf32, #tpu.memory_space<vmem>>, vector<1x64x64xf32>
    %12 = vector.shape_cast %11 : vector<1x64x64xf32> to vector<64x64xf32>
    %cst_9 = arith.constant dense<0.000000e+00> : vector<16x64xf32>
    %13 = tpu.matmul %10, %12, %cst_9 {dimension_numbers = #tpu.dot_dimension_numbers<[1], [0], [0], [1], [0, 0, 1, 1], [], []>} : vector<16x64xf32>, vector<64x64xf32>, vector<16x64xf32> -> vector<16x64xf32>
    %14 = arith.addf %9, %13 : vector<16x64xf32>
    %15 = vector.extract_strided_slice %3 {offsets = [2, 0], sizes = [16, 64], strides = [1, 1]} : vector<18x64xf32> to vector<16x64xf32>
    %c2 = arith.constant 2 : index
    %c0_10 = arith.constant 0 : index
    %c0_11 = arith.constant 0 : index
    %16 = vector.load %arg2[%c2, %c0_10, %c0_11] : memref<3x64x64xf32, #tpu.memory_space<vmem>>, vector<1x64x64xf32>
    %17 = vector.shape_cast %16 : vector<1x64x64xf32> to vector<64x64xf32>
    %cst_12 = arith.constant dense<0.000000e+00> : vector<16x64xf32>
    %18 = tpu.matmul %15, %17, %cst_12 {dimension_numbers = #tpu.dot_dimension_numbers<[1], [0], [0], [1], [0, 0, 1, 1], [], []>} : vector<16x64xf32>, vector<64x64xf32>, vector<16x64xf32> -> vector<16x64xf32>
    %19 = arith.addf %14, %18 : vector<16x64xf32>
    %c0_13 = arith.constant 0 : index
    %c0_14 = arith.constant 0 : index
    %20 = vector.load %arg3[%c0_13, %c0_14] : memref<1x64xf32, #tpu.memory_space<vmem>>, vector<1x64xf32>
    %21 = vector.broadcast %20 : vector<1x64xf32> to vector<16x64xf32>
    %22 = arith.addf %19, %21 : vector<16x64xf32>
    %cst_15 = arith.constant 0.000000e+00 : f32
    %23 = vector.broadcast %cst_15 : f32 to vector<16x64xf32>
    %24 = arith.maximumf %22, %23 : vector<16x64xf32>
    %25 = tpu.concatenate %2, %24, %2 in 0 : vector<1x64xf32>, vector<16x64xf32>, vector<1x64xf32> -> vector<18x64xf32>
    %cst_16 = arith.constant 0.000000e+00 : f32
    %26 = vector.broadcast %cst_16 : f32 to vector<16x64xf32>
    %27 = vector.extract_strided_slice %25 {offsets = [0, 0], sizes = [16, 64], strides = [1, 1]} : vector<18x64xf32> to vector<16x64xf32>
    %c0_17 = arith.constant 0 : index
    %c0_18 = arith.constant 0 : index
    %c0_19 = arith.constant 0 : index
    %28 = vector.load %arg4[%c0_17, %c0_18, %c0_19] : memref<3x64x64xf32, #tpu.memory_space<vmem>>, vector<1x64x64xf32>
    %29 = vector.shape_cast %28 : vector<1x64x64xf32> to vector<64x64xf32>
    %cst_20 = arith.constant dense<0.000000e+00> : vector<16x64xf32>
    %30 = tpu.matmul %27, %29, %cst_20 {dimension_numbers = #tpu.dot_dimension_numbers<[1], [0], [0], [1], [0, 0, 1, 1], [], []>} : vector<16x64xf32>, vector<64x64xf32>, vector<16x64xf32> -> vector<16x64xf32>
    %31 = arith.addf %26, %30 : vector<16x64xf32>
    %32 = vector.extract_strided_slice %25 {offsets = [1, 0], sizes = [16, 64], strides = [1, 1]} : vector<18x64xf32> to vector<16x64xf32>
    %c1_21 = arith.constant 1 : index
    %c0_22 = arith.constant 0 : index
    %c0_23 = arith.constant 0 : index
    %33 = vector.load %arg4[%c1_21, %c0_22, %c0_23] : memref<3x64x64xf32, #tpu.memory_space<vmem>>, vector<1x64x64xf32>
    %34 = vector.shape_cast %33 : vector<1x64x64xf32> to vector<64x64xf32>
    %cst_24 = arith.constant dense<0.000000e+00> : vector<16x64xf32>
    %35 = tpu.matmul %32, %34, %cst_24 {dimension_numbers = #tpu.dot_dimension_numbers<[1], [0], [0], [1], [0, 0, 1, 1], [], []>} : vector<16x64xf32>, vector<64x64xf32>, vector<16x64xf32> -> vector<16x64xf32>
    %36 = arith.addf %31, %35 : vector<16x64xf32>
    %37 = vector.extract_strided_slice %25 {offsets = [2, 0], sizes = [16, 64], strides = [1, 1]} : vector<18x64xf32> to vector<16x64xf32>
    %c2_25 = arith.constant 2 : index
    %c0_26 = arith.constant 0 : index
    %c0_27 = arith.constant 0 : index
    %38 = vector.load %arg4[%c2_25, %c0_26, %c0_27] : memref<3x64x64xf32, #tpu.memory_space<vmem>>, vector<1x64x64xf32>
    %39 = vector.shape_cast %38 : vector<1x64x64xf32> to vector<64x64xf32>
    %cst_28 = arith.constant dense<0.000000e+00> : vector<16x64xf32>
    %40 = tpu.matmul %37, %39, %cst_28 {dimension_numbers = #tpu.dot_dimension_numbers<[1], [0], [0], [1], [0, 0, 1, 1], [], []>} : vector<16x64xf32>, vector<64x64xf32>, vector<16x64xf32> -> vector<16x64xf32>
    %41 = arith.addf %36, %40 : vector<16x64xf32>
    %c0_29 = arith.constant 0 : index
    %c0_30 = arith.constant 0 : index
    %42 = vector.load %arg5[%c0_29, %c0_30] : memref<1x64xf32, #tpu.memory_space<vmem>>, vector<1x64xf32>
    %43 = vector.broadcast %42 : vector<1x64xf32> to vector<16x64xf32>
    %44 = arith.addf %41, %43 : vector<16x64xf32>
    %45 = arith.addf %1, %44 : vector<16x64xf32>
    %cst_31 = arith.constant 0.000000e+00 : f32
    %46 = vector.broadcast %cst_31 : f32 to vector<16x64xf32>
    %47 = arith.maximumf %45, %46 : vector<16x64xf32>
    %c0_32 = arith.constant 0 : index
    %c0_33 = arith.constant 0 : index
    %c0_34 = arith.constant 0 : index
    %48 = vector.load %arg6[%c0_32, %c0_33, %c0_34] : memref<1x16x64xf32, #tpu.memory_space<vmem>>, vector<1x16x64xf32>
    %49 = vector.shape_cast %48 : vector<1x16x64xf32> to vector<16x64xf32>
    %50 = vector.shape_cast %47 : vector<16x64xf32> to vector<1x16x64xf32>
    tpu.vector_store %arg6[%c0_32, %c0_33, %c0_34], %50 {strides = array<i32>} : memref<1x16x64xf32, #tpu.memory_space<vmem>>, vector<1x16x64xf32>,
    return
  }
  func.func @transform_0(%arg0: i32) -> (i32, i32, i32) {
    %c0_i32 = arith.constant 0 : i32
    %c0_i32_0 = arith.constant 0 : i32
    %c0_i32_1 = arith.constant 0 : i32
    return %arg0, %c0_i32, %c0_i32_0 : i32, i32, i32
  }
  func.func @transform_1(%arg0: i32) -> (i32, i32, i32) {
    %c0_i32 = arith.constant 0 : i32
    %c0_i32_0 = arith.constant 0 : i32
    %c0_i32_1 = arith.constant 0 : i32
    %c0_i32_2 = arith.constant 0 : i32
    return %c0_i32, %c0_i32_0, %c0_i32_1 : i32, i32, i32
  }
  func.func @transform_2(%arg0: i32) -> (i32, i32) {
    %c0_i32 = arith.constant 0 : i32
    %c0_i32_0 = arith.constant 0 : i32
    %c0_i32_1 = arith.constant 0 : i32
    return %c0_i32, %c0_i32_0 : i32, i32
  }
  func.func @transform_3(%arg0: i32) -> (i32, i32, i32) {
    %c0_i32 = arith.constant 0 : i32
    %c0_i32_0 = arith.constant 0 : i32
    %c0_i32_1 = arith.constant 0 : i32
    %c0_i32_2 = arith.constant 0 : i32
    return %c0_i32, %c0_i32_0, %c0_i32_1 : i32, i32, i32
  }
  func.func @transform_4(%arg0: i32) -> (i32, i32) {
    %c0_i32 = arith.constant 0 : i32
    %c0_i32_0 = arith.constant 0 : i32
    %c0_i32_1 = arith.constant 0 : i32
    return %c0_i32, %c0_i32_0 : i32, i32
  }
  func.func @transform_5(%arg0: i32) -> (i32, i32, i32) {
    %c0_i32 = arith.constant 0 : i32
    %c0_i32_0 = arith.constant 0 : i32
    %c0_i32_1 = arith.constant 0 : i32
    return %arg0, %c0_i32, %c0_i32_0 : i32, i32, i32
  }
}

</mosaic_0001>

<llo_original>
// kernel: tpu_custom_call.1
$region0: #{tpu_custom_call.1}
  #allocation0 [shape = 'u32[]', space=smem, size = 0x4, offset = 0x4, fixed_abs, tag = 'smem constant byte address 0x4 - core index']
  #allocation1 [shape = 'u32[144,128]{1,0:T(1,128)}', space=vmem, size = 0x12000, scoped, tag = 'internal scratch']
  %s0 = inlined_call_operand.hbm [shape: f32[2,16,64], index: 0, kind: input, shape index: {}]
  %s1 = inlined_call_operand.hbm [shape: f32[3,64,64], index: 1, kind: input, shape index: {}]
  %s2 = inlined_call_operand.vmem [shape: f32[1,64], index: 2, kind: input, shape index: {}]
  %s3 = inlined_call_operand.hbm [shape: f32[3,64,64], index: 3, kind: input, shape index: {}]
  %s4 = inlined_call_operand.vmem [shape: f32[1,64], index: 4, kind: input, shape index: {}]
  %s5 = inlined_call_operand.hbm [shape: f32[2,16,64], index: 5, kind: output, shape index: {}]
  %s6 = sld [smem:[#allocation0]]
  $region65: #{tpu_custom_call.1} parent=0
    _
  %s8 = ssub.s32 1, %s6
  %s9 = scalar_select 0, %s8, %s6
  $region1: #{tpu_custom_call.1} parent=0
    #allocation2 [shape = 'u8[16384]{0}', space=vmem, size = 0x4000, scoped, tag = 'input window, operand 0']
    #allocation3 [shape = 's32[2]{0}', space=sflag, size = 0x8, scoped, tag = 'scoped memory for tpu_custom_call.1']
    #allocation4 [shape = 's32[2]{0}', space=sflag, size = 0x8, scoped, tag = 'scoped memory for tpu_custom_call.1']
    #allocation5 [shape = 'u8[98304]{0}', space=vmem, size = 0x18000, scoped, tag = 'input window, operand 1, single buffered']
    #allocation6 [shape = 's32[1]{0}', space=sflag, size = 0x4, scoped, tag = 'scoped memory for tpu_custom_call.1']
    #allocation7 [shape = 'u8[98304]{0}', space=vmem, size = 0x18000, scoped, tag = 'input window, operand 3, single buffered']
    #allocation8 [shape = 'u8[16384]{0}', space=vmem, size = 0x4000, scoped, tag = 'output window, operand 0']
    %10 = vsyncpa [#allocation3], 0
    %s11 = scalar_lea.sflag [#allocation3], 1
    %12 = vsyncpa %s11, 0
    %13 = vsyncpa [#allocation6], 0
    %14 = vsyncpa [#allocation4], 0
    %s15 = scalar_lea.sflag [#allocation4], 1
    %16 = vsyncpa %s15, 0
    loop: start=0, step=1, limit=4
    $region2: #{tpu_custom_call.1} parent=1 // loop_pre_header
      _
    $region3: #{tpu_custom_call.1} parent=1 // loop_header
      %s18 = sphi 0, %s22
      %p19 = scmp.ge.s32.totalorder %s18, 4
      %s28 = sphi 0, %s30
      %s31 = sphi 0, %s28
      %s32 = sphi 0, %s31
      %s48 = sphi 0, %s32
      %s52 = sphi 0, %s52
      %s54 = sphi 0, %s52
      %s55 = sphi 0, %s54
      %s69 = sphi 0, %s55
      %s73 = sphi 0, %s73
      %s75 = sphi 0, %s73
      %s76 = sphi 0, %s75
      %s90 = sphi 0, %s76
      %s94 = sphi 0, %s94
      %s96 = sphi 0, %s94
      %s97 = sphi 0, %s96
      %s111 = sphi 0, %s97
      %s115 = sphi 0, %s115
      %s117 = sphi 0, %s115
      %s118 = sphi 0, %s117
      %s132 = sphi 0, %s118
      %s138 = sphi 0, %s140
      %s141 = sphi 0, %s138
      %s142 = sphi 0, %s141
      %s158 = sphi 0, %s142
    $region4: #{tpu_custom_call.1} parent=1 // loop_header_branch
      %21 = sbr.rel (%p19) target = $region8
    $region5: #{tpu_custom_call.1} parent=1 // loop_body
      %s23 = ssub.s32 %s18, 1
      %s24 = ssub.s32 %s18, 2
      %s25 = sadd.s32 %s18, 1
      %s26 = ssub.s32 %s18, %s25
      %p27 = scmp.eq.s32.totalorder %s26, 0
      %s29 = sadd.s32 %s28, 1
      %s30 = scalar_select %p27, %s28, %s29
      %p33 = pneg %p27
      %p34 = scmp.eq.s32.totalorder %s18, 1
      %p35 = por %p33, %p34
      %p36 = scmp.ne.s32.totalorder %s28, %s31
      %p37 = scmp.eq.s32.totalorder %s18, 0
      %p38 = por %p36, %p37
      %p39 = scmp.ne.s32.totalorder %s28, %s31
      %p40 = scmp.eq.s32.totalorder %s23, 1
      %p41 = por %p39, %p40
      %p42 = scmp.ne.s32.totalorder %s31, %s32
      %p43 = scmp.eq.s32.totalorder %s23, 0
      %p44 = por %p42, %p43
      %p45 = scmp.ne.s32.totalorder %s31, %s32
      %p46 = scmp.eq.s32.totalorder %s24, 1
      %p47 = por %p45, %p46
      %p49 = scmp.ne.s32.totalorder %s32, %s48
      %p50 = scmp.eq.s32.totalorder %s24, 0
      %p51 = por %p49, %p50
      %s53 = sadd.s32 %s52, 1
      %p56 = scmp.eq.s32.totalorder %s18, 1
      %p57 = scmp.ne.s32.totalorder %s52, %s54
      %p58 = scmp.eq.s32.totalorder %s18, 0
      %p59 = por %p57, %p58
      %p60 = scmp.ne.s32.totalorder %s52, %s54
      %p61 = scmp.eq.s32.totalorder %s23, 1
      %p62 = por %p60, %p61
      %p63 = scmp.ne.s32.totalorder %s54, %s55
      %p64 = scmp.eq.s32.totalorder %s23, 0
      %p65 = por %p63, %p64
      %p66 = scmp.ne.s32.totalorder %s54, %s55
      %p67 = scmp.eq.s32.totalorder %s24, 1
      %p68 = por %p66, %p67
      %p70 = scmp.ne.s32.totalorder %s55, %s69
      %p71 = scmp.eq.s32.totalorder %s24, 0
      %p72 = por %p70, %p71
      %s74 = sadd.s32 %s73, 1
      %p77 = scmp.eq.s32.totalorder %s18, 1
      %p78 = scmp.ne.s32.totalorder %s73, %s75
      %p79 = scmp.eq.s32.totalorder %s18, 0
      %p80 = por %p78, %p79
      %p81 = scmp.ne.s32.totalorder %s73, %s75
      %p82 = scmp.eq.s32.totalorder %s23, 1
      %p83 = por %p81, %p82
      %p84 = scmp.ne.s32.totalorder %s75, %s76
      %p85 = scmp.eq.s32.totalorder %s23, 0
      %p86 = por %p84, %p85
      %p87 = scmp.ne.s32.totalorder %s75, %s76
      %p88 = scmp.eq.s32.totalorder %s24, 1
      %p89 = por %p87, %p88
      %p91 = scmp.ne.s32.totalorder %s76, %s90
      %p92 = scmp.eq.s32.totalorder %s24, 0
      %p93 = por %p91, %p92
      %s95 = sadd.s32 %s94, 1
      %p98 = scmp.eq.s32.totalorder %s18, 1
      %p99 = scmp.ne.s32.totalorder %s94, %s96
      %p100 = scmp.eq.s32.totalorder %s18, 0
      %p101 = por %p99, %p100
      %p102 = scmp.ne.s32.totalorder %s94, %s96
      %p103 = scmp.eq.s32.totalorder %s23, 1
      %p104 = por %p102, %p103
      %p105 = scmp.ne.s32.totalorder %s96, %s97
      %p106 = scmp.eq.s32.totalorder %s23, 0
      %p107 = por %p105, %p106
      %p108 = scmp.ne.s32.totalorder %s96, %s97
      %p109 = scmp.eq.s32.totalorder %s24, 1
      %p110 = por %p108, %p109
      %p112 = scmp.ne.s32.totalorder %s97, %s111
      %p113 = scmp.eq.s32.totalorder %s24, 0
      %p114 = por %p112, %p113
      %s116 = sadd.s32 %s115, 1
      %p119 = scmp.eq.s32.totalorder %s18, 1
      %p120 = scmp.ne.s32.totalorder %s115, %s117
      %p121 = scmp.eq.s32.totalorder %s18, 0
      %p122 = por %p120, %p121
      %p123 = scmp.ne.s32.totalorder %s115, %s117
      %p124 = scmp.eq.s32.totalorder %s23, 1
      %p125 = por %p123, %p124
      %p126 = scmp.ne.s32.totalorder %s117, %s118
      %p127 = scmp.eq.s32.totalorder %s23, 0
      %p128 = por %p126, %p127
      %p129 = scmp.ne.s32.totalorder %s117, %s118
      %p130 = scmp.eq.s32.totalorder %s24, 1
      %p131 = por %p129, %p130
      %p133 = scmp.ne.s32.totalorder %s118, %s132
      %p134 = scmp.eq.s32.totalorder %s24, 0
      %p135 = por %p133, %p134
      %s136 = ssub.s32 %s18, %s25
      %p137 = scmp.eq.s32.totalorder %s136, 0
      %s139 = sadd.s32 %s138, 1
      %s140 = scalar_select %p137, %s138, %s139
      %p143 = pneg %p137
      %p144 = scmp.eq.s32.totalorder %s18, 1
      %p145 = por %p143, %p144
      %p146 = scmp.ne.s32.totalorder %s138, %s141
      %p147 = scmp.eq.s32.totalorder %s18, 0
      %p148 = por %p146, %p147
      %p149 = scmp.ne.s32.totalorder %s138, %s141
      %p150 = scmp.eq.s32.totalorder %s23, 1
      %p151 = por %p149, %p150
      %p152 = scmp.ne.s32.totalorder %s141, %s142
      %p153 = scmp.eq.s32.totalorder %s23, 0
      %p154 = por %p152, %p153
      %p155 = scmp.ne.s32.totalorder %s141, %s142
      %p156 = scmp.eq.s32.totalorder %s24, 1
      %p157 = por %p155, %p156
      %p159 = scmp.ne.s32.totalorder %s142, %s158
      %p160 = scmp.eq.s32.totalorder %s24, 0
      %p161 = por %p159, %p160
      %p162 = scmp.le.s32.totalorder 1, %s18
      %p163 = scmp.lt.s32.totalorder %s18, 3
      %p164 = pnand %p162, %p163
      %p165 = pneg %p164
      // Predicated region
      $region9: #{tpu_custom_call.1} parent=5 // pred_check
        _
      $region10: #{tpu_custom_call.1} parent=5 // pred_check_branch
        %167 = sbr.rel (%p164) target = $region12
      $region11: #{tpu_custom_call.1} parent=5 // pred_region
        %s168 = ssub.s32 %s18, 1
        // Predicated region
        $region13: #{tpu_custom_call.1} parent=11 // pred_check
          %p169 = pneg %p65
        $region14: #{tpu_custom_call.1} parent=11 // pred_check_branch
          %171 = sbr.rel (%p169) target = $region16
        $region15: #{tpu_custom_call.1} parent=11 // pred_region
          %s173 = ssub.s32 3072, 3072
          %174 = vsyncadd [#allocation6], %s173
          %s175 = sshll.u32 [#allocation5], 4
          %s176 = int_to_ptr.vmem [resolvable:$true] %s175
          %181 = dma.hbm_to_vmem [thread:$0]  %s1, 3072, %s176, [#allocation6], 128, 128, 8
        $region16: #{tpu_custom_call.1} parent=11 // pred_fallthru
          _
        // Predicated region
        $region17: #{tpu_custom_call.1} parent=11 // pred_check
          %p182 = pneg %p86
        $region18: #{tpu_custom_call.1} parent=11 // pred_check_branch
          %184 = sbr.rel (%p182) target = $region20
        $region19: #{tpu_custom_call.1} parent=11 // pred_region
          _
        $region20: #{tpu_custom_call.1} parent=11 // pred_fallthru
          _
        // Predicated region
        $region21: #{tpu_custom_call.1} parent=11 // pred_check
          %p185 = pneg %p107
        $region22: #{tpu_custom_call.1} parent=11 // pred_check_branch
          %187 = sbr.rel (%p185) target = $region24
        $region23: #{tpu_custom_call.1} parent=11 // pred_region
          %s189 = ssub.s32 3072, 3072
          %190 = vsyncadd [#allocation6], %s189
          %s191 = sshll.u32 [#allocation7], 4
          %s192 = int_to_ptr.vmem [resolvable:$true] %s191
          %197 = dma.hbm_to_vmem [thread:$0]  %s3, 3072, %s192, [#allocation6], 128, 128, 8
        $region24: #{tpu_custom_call.1} parent=11 // pred_fallthru
          _
        // Predicated region
        $region25: #{tpu_custom_call.1} parent=11 // pred_check
          %p198 = pneg %p128
        $region26: #{tpu_custom_call.1} parent=11 // pred_check_branch
          %200 = sbr.rel (%p198) target = $region28
        $region27: #{tpu_custom_call.1} parent=11 // pred_region
          _
        $region28: #{tpu_custom_call.1} parent=11 // pred_fallthru
          _
      $region12: #{tpu_custom_call.1} parent=5 // pred_fallthru
        _
      %p201 = scmp.lt.s32.totalorder %s18, 2
      // Predicated region
      $region29: #{tpu_custom_call.1} parent=5 // pred_check
        %p202 = pneg %p201
      $region30: #{tpu_custom_call.1} parent=5 // pred_check_branch
        %204 = sbr.rel (%p202) target = $region32
      $region31: #{tpu_custom_call.1} parent=5 // pred_region
        // Predicated region
        $region33: #{tpu_custom_call.1} parent=31 // pred_check
          %p205 = pneg %p38
        $region34: #{tpu_custom_call.1} parent=31 // pred_check_branch
          %207 = sbr.rel (%p205) target = $region36
        $region35: #{tpu_custom_call.1} parent=31 // pred_region
          %s208 = sand.u32 %s28, 1
          %s209 = scalar_lea.sflag [#allocation3], %s208
          %s210 = sand.u32 %s28, 1
          %s211 = smul.addr %s210, 16
          %s212 = scalar_lea.vmem [#allocation2], %s211
          %s214 = ssub.s32 256, 256
          %215 = vsyncadd %s209, %s214
          %s216 = smul.addr %s18, 2
          %s217 = smul.addr %s216, 128
          %s218 = scalar_lea.hbm %s0, %s217
          %s219 = sshll.u32 %s212, 4
          %s220 = int_to_ptr.vmem [resolvable:$true] %s219
          %225 = dma.hbm_to_vmem [thread:$0]  %s218, 256, %s220, %s209, 128, 128, 8
        $region36: #{tpu_custom_call.1} parent=31 // pred_fallthru
          _
      $region32: #{tpu_custom_call.1} parent=5 // pred_fallthru
        _
      %p226 = scmp.le.s32.totalorder 1, %s18
      %p227 = scmp.lt.s32.totalorder %s18, 3
      %p228 = pnand %p226, %p227
      %p229 = pneg %p228
      // Predicated region
      $region37: #{tpu_custom_call.1} parent=5 // pred_check
        _
      $region38: #{tpu_custom_call.1} parent=5 // pred_check_branch
        %231 = sbr.rel (%p228) target = $region40
      $region39: #{tpu_custom_call.1} parent=5 // pred_region
        %s232 = ssub.s32 %s18, 1
        %s233 = sand.u32 %s31, 1
        %s234 = scalar_lea.sflag [#allocation3], %s233
        %s235 = sand.u32 %s31, 1
        %s236 = smul.addr %s235, 16
        %s237 = scalar_lea.vmem [#allocation2], %s236
        // Predicated region
        $region41: #{tpu_custom_call.1} parent=39 // pred_check
          %p238 = pneg %p44
        $region42: #{tpu_custom_call.1} parent=39 // pred_check_branch
          %240 = sbr.rel (%p238) target = $region44
        $region43: #{tpu_custom_call.1} parent=39 // pred_region
          %241 = dma.done %s234, 256
        $region44: #{tpu_custom_call.1} parent=39 // pred_fallthru
          _
        // Predicated region
        $region45: #{tpu_custom_call.1} parent=39 // pred_check
          %p242 = pneg %p65
        $region46: #{tpu_custom_call.1} parent=39 // pred_check_branch
          %244 = sbr.rel (%p242) target = $region48
        $region47: #{tpu_custom_call.1} parent=39 // pred_region
          %245 = dma.done [#allocation6], 3072
        $region48: #{tpu_custom_call.1} parent=39 // pred_fallthru
          _
        // Predicated region
        $region49: #{tpu_custom_call.1} parent=39 // pred_check
          %p246 = pneg %p107
        $region50: #{tpu_custom_call.1} parent=39 // pred_check_branch
          %248 = sbr.rel (%p246) target = $region52
        $region51: #{tpu_custom_call.1} parent=39 // pred_region
          %249 = dma.done [#allocation6], 3072
        $region52: #{tpu_custom_call.1} parent=39 // pred_fallthru
          _
        %s250 = sand.u32 %s31, 1
        %s251 = scalar_lea.sflag [#allocation3], %s250
        %s252 = sand.u32 %s31, 1
        %s253 = smul.addr %s252, 16
        %s254 = scalar_lea.vmem [#allocation2], %s253
        %p255 = pneg %p44
        %p256 = pneg %p41
        %p257 = pneg %p65
        %p258 = pneg %p62
        %p259 = pneg %p86
        %p260 = pneg %p83
        %p261 = pneg %p107
        %p262 = pneg %p104
        %p263 = pneg %p128
        %p264 = pneg %p125
        %p265 = pneg %p154
        %p266 = pneg %p151
        %s267 = sand.u32 %s141, 1
        %s268 = scalar_lea.sflag [#allocation4], %s267
        %s269 = sand.u32 %s141, 1
        %s270 = smul.addr %s269, 16
        %s271 = scalar_lea.vmem [#allocation8], %s270
        %v272 = vld [vmem:[%s237] sm:$0xff]
        %v273 = vld [vmem:[%s237 + $0x8] sm:$0xff]
        %vm276 = vcmask 1040384
        %v277 = vrot.slane %v272, 7
        %v278 = vrot.slane %v273, 7
        %v279 = vsel %vm276, %v277, %v278
        %v282 = vsel %vm276, 0.0, %v277
        %v283 = vsel %vm276, %v278, 0.0
        %v284 = vld [vmem:[#allocation5] sm:$0xff]
        %v285 = vld [vmem:[#allocation5 + $0x8] sm:$0xff]
        %v286 = vld [vmem:[#allocation5 + $0x10] sm:$0xff]
        %v287 = vld [vmem:[#allocation5 + $0x18] sm:$0xff]
        %v288 = vld [vmem:[#allocation5 + $0x20] sm:$0xff]
        %v289 = vld [vmem:[#allocation5 + $0x28] sm:$0xff]
        %v290 = vld [vmem:[#allocation5 + $0x30] sm:$0xff]
        %v291 = vld [vmem:[#allocation5 + $0x38] sm:$0xff]
        %s292 = scalar_lea.vmem [#allocation5], 64
        %v293 = vld [vmem:[%s292] sm:$0xff]
        %v294 = vld [vmem:[%s292 + $0x8] sm:$0xff]
        %v295 = vld [vmem:[%s292 + $0x10] sm:$0xff]
        %v296 = vld [vmem:[%s292 + $0x18] sm:$0xff]
        %v297 = vld [vmem:[%s292 + $0x20] sm:$0xff]
        %v298 = vld [vmem:[%s292 + $0x28] sm:$0xff]
        %v299 = vld [vmem:[%s292 + $0x30] sm:$0xff]
        %v300 = vld [vmem:[%s292 + $0x38] sm:$0xff]
        %vm303 = vcmask 1046528
        %v304 = vrot.slane %v282, 1
        %v305 = vrot.slane %v279, 1
        %v306 = vsel %vm303, %v304, %v305
        %v307 = vrot.slane %v283, 1
        %v308 = vsel %vm303, %v305, %v307
        %vm309 = vcmask 523264
        %v310 = vsel %vm309, %v306, 0
        %v312 = vsel %vm309, %v308, 0
        %314 = vmatprep.subr.mxu0 0.0
        %315 = vmatpush1.msra.mxu0 %v293
        %316 = vmatprep.subr.mxu0 0.0
        %317 = vmatpush1.msra.mxu0 %v294
        %318 = vmatprep.subr.mxu0 0.0
        %319 = vmatpush1.msra.mxu0 %v295
        %320 = vmatprep.subr.mxu0 0.0
        %321 = vmatpush1.msra.mxu0 %v296
        %322 = vmatprep.subr.mxu0 0.0
        %323 = vmatpush1.msra.mxu0 %v297
        %324 = vmatprep.subr.mxu0 0.0
        %325 = vmatpush1.msra.mxu0 %v298
        %326 = vmatprep.subr.mxu0 0.0
        %327 = vmatpush1.msra.mxu0 %v299
        %328 = vmatprep.subr.mxu0 0.0
        %329 = vmatpush1.msra.mxu0 %v300
        %330 = vmatprep.subr.mxu0 0.0
        %331 = vmatpush1.msra.mxu0 0.0
        %332 = vmatprep.subr.mxu0 0.0
        %333 = vmatpush1.msra.mxu0 0.0
        %334 = vmatprep.subr.mxu0 0.0
        %335 = vmatpush1.msra.mxu0 0.0
        %336 = vmatprep.subr.mxu0 0.0
        %337 = vmatpush1.msra.mxu0 0.0
        %338 = vmatprep.subr.mxu0 0.0
        %339 = vmatpush1.msra.mxu0 0.0
        %340 = vmatprep.subr.mxu0 0.0
        %341 = vmatpush1.msra.mxu0 0.0
        %342 = vmatprep.subr.mxu0 0.0
        %343 = vmatpush1.msra.mxu0 0.0
        %344 = vmatprep.subr.mxu0 0.0
        %345 = vmatpush1.msra.mxu0 0.0
        %346 = vmatprep.subr.mxu0 0.0
        %347 = vmatpush1.msra.mxu0 0.0
        %348 = vmatprep.subr.mxu0 0.0
        %349 = vmatpush1.msra.mxu0 0.0
        %350 = vmatprep.subr.mxu0 0.0
        %351 = vmatpush1.msra.mxu0 0.0
        %352 = vmatprep.subr.mxu0 0.0
        %353 = vmatpush1.msra.mxu0 0.0
        %354 = vmatprep.subr.mxu0 0.0
        %355 = vmatpush1.msra.mxu0 0.0
        %356 = vmatprep.subr.mxu0 0.0
        %357 = vmatpush1.msra.mxu0 0.0
        %358 = vmatprep.subr.mxu0 0.0
        %359 = vmatpush1.msra.mxu0 0.0
        %360 = vmatprep.subr.mxu0 0.0
        %361 = vmatpush1.msra.mxu0 0.0
        %362 = vmatprep.subr.mxu0 0.0
        %363 = vmatpush1.msra.mxu0 0.0
        %364 = vmatprep.subr.mxu0 0.0
        %365 = vmatpush1.msra.mxu0 0.0
        %366 = vmatprep.subr.mxu0 0.0
        %367 = vmatpush1.msra.mxu0 0.0
        %368 = vmatprep.subr.mxu0 0.0
        %369 = vmatpush1.msra.mxu0 0.0
        %370 = vmatprep.subr.mxu0 0.0
        %371 = vmatpush1.msra.mxu0 0.0
        %372 = vmatprep.subr.mxu0 0.0
        %373 = vmatpush1.msra.mxu0 0.0
        %374 = vmatprep.subr.mxu0 0.0
        %375 = vmatpush1.msra.mxu0 0.0
        %376 = vmatprep.subr.mxu0 0.0
        %377 = vmatpush1.msra.mxu0 0.0
        %378 = vmatprep.mubr.f32.mxu0 0.0
        %379 = vmatmul.mubr.f32.gmra.mrb[0].mxu0 %v310
        %v380 = vpop.f32.mrb[0].mxu0
        %v381 = vadd.f32 0.0, %v380
        %v382 = vpop.f32.mrb[0].mxu0
        %383 = vmatprep.mubr.f32.mxu0 0.0
        %384 = vmatmul.mubr.f32.gmra.mrb[0].mxu0 %v312
        %v385 = vpop.f32.mrb[0].mxu0
        %v386 = vadd.f32 0.0, %v385
        %v387 = vpop.f32.mrb[0].mxu0
        %388 = vdwg.mxu0
        %v389 = vsel %vm309, %v282, 0
        %v391 = vsel %vm309, %v279, 0
        %393 = vmatprep.subr.mxu0 0.0
        %394 = vmatpush1.msra.mxu0 %v284
        %395 = vmatprep.subr.mxu0 0.0
        %396 = vmatpush1.msra.mxu0 %v285
        %397 = vmatprep.subr.mxu0 0.0
        %398 = vmatpush1.msra.mxu0 %v286
        %399 = vmatprep.subr.mxu0 0.0
        %400 = vmatpush1.msra.mxu0 %v287
        %401 = vmatprep.subr.mxu0 0.0
        %402 = vmatpush1.msra.mxu0 %v288
        %403 = vmatprep.subr.mxu0 0.0
        %404 = vmatpush1.msra.mxu0 %v289
        %405 = vmatprep.subr.mxu0 0.0
        %406 = vmatpush1.msra.mxu0 %v290
        %407 = vmatprep.subr.mxu0 0.0
        %408 = vmatpush1.msra.mxu0 %v291
        %409 = vmatprep.subr.mxu0 0.0
        %410 = vmatpush1.msra.mxu0 0.0
        %411 = vmatprep.subr.mxu0 0.0
        %412 = vmatpush1.msra.mxu0 0.0
        %413 = vmatprep.subr.mxu0 0.0
        %414 = vmatpush1.msra.mxu0 0.0
        %415 = vmatprep.subr.mxu0 0.0
        %416 = vmatpush1.msra.mxu0 0.0
        %417 = vmatprep.subr.mxu0 0.0
        %418 = vmatpush1.msra.mxu0 0.0
        %419 = vmatprep.subr.mxu0 0.0
        %420 = vmatpush1.msra.mxu0 0.0
        %421 = vmatprep.subr.mxu0 0.0
        %422 = vmatpush1.msra.mxu0 0.0
        %423 = vmatprep.subr.mxu0 0.0
        %424 = vmatpush1.msra.mxu0 0.0
        %425 = vmatprep.subr.mxu0 0.0
        %426 = vmatpush1.msra.mxu0 0.0
        %427 = vmatprep.subr.mxu0 0.0
        %428 = vmatpush1.msra.mxu0 0.0
        %429 = vmatprep.subr.mxu0 0.0
        %430 = vmatpush1.msra.mxu0 0.0
        %431 = vmatprep.subr.mxu0 0.0
        %432 = vmatpush1.msra.mxu0 0.0
        %433 = vmatprep.subr.mxu0 0.0
        %434 = vmatpush1.msra.mxu0 0.0
        %435 = vmatprep.subr.mxu0 0.0
        %436 = vmatpush1.msra.mxu0 0.0
        %437 = vmatprep.subr.mxu0 0.0
        %438 = vmatpush1.msra.mxu0 0.0
        %439 = vmatprep.subr.mxu0 0.0
        %440 = vmatpush1.msra.mxu0 0.0
        %441 = vmatprep.subr.mxu0 0.0
        %442 = vmatpush1.msra.mxu0 0.0
        %443 = vmatprep.subr.mxu0 0.0
        %444 = vmatpush1.msra.mxu0 0.0
        %445 = vmatprep.subr.mxu0 0.0
        %446 = vmatpush1.msra.mxu0 0.0
        %447 = vmatprep.subr.mxu0 0.0
        %448 = vmatpush1.msra.mxu0 0.0
        %449 = vmatprep.subr.mxu0 0.0
        %450 = vmatpush1.msra.mxu0 0.0
        %451 = vmatprep.subr.mxu0 0.0
        %452 = vmatpush1.msra.mxu0 0.0
        %453 = vmatprep.subr.mxu0 0.0
        %454 = vmatpush1.msra.mxu0 0.0
        %455 = vmatprep.subr.mxu0 0.0
        %456 = vmatpush1.msra.mxu0 0.0
        %457 = vmatprep.mubr.f32.mxu0 0.0
        %458 = vmatmul.mubr.f32.gmra.mrb[0].mxu0 %v389
        %v459 = vpop.f32.mrb[0].mxu0
        %v460 = vadd.f32 %v381, %v459
        %v461 = vpop.f32.mrb[0].mxu0
        %462 = vmatprep.mubr.f32.mxu0 0.0
        %463 = vmatmul.mubr.f32.gmra.mrb[0].mxu0 %v391
        %v464 = vpop.f32.mrb[0].mxu0
        %v465 = vadd.f32 %v386, %v464
        %v466 = vpop.f32.mrb[0].mxu0
        %467 = vdwg.mxu0
        %s468 = scalar_lea.vmem [#allocation5], 128
        %v469 = vld [vmem:[%s468] sm:$0xff]
        %v470 = vld [vmem:[%s468 + $0x8] sm:$0xff]
        %v471 = vld [vmem:[%s468 + $0x10] sm:$0xff]
        %v472 = vld [vmem:[%s468 + $0x18] sm:$0xff]
        %v473 = vld [vmem:[%s468 + $0x20] sm:$0xff]
        %v474 = vld [vmem:[%s468 + $0x28] sm:$0xff]
        %v475 = vld [vmem:[%s468 + $0x30] sm:$0xff]
        %v476 = vld [vmem:[%s468 + $0x38] sm:$0xff]
        %vm477 = vcmask 1045504
        %v478 = vrot.slane %v282, 2
        %v479 = vrot.slane %v279, 2
        %v480 = vsel %vm477, %v478, %v479
        %v481 = vrot.slane %v283, 2
        %v482 = vsel %vm477, %v479, %v481
        %v483 = vsel %vm309, %v480, 0
        %v485 = vsel %vm309, %v482, 0
        %487 = vmatprep.subr.mxu0 0.0
        %488 = vmatpush1.msra.mxu0 %v469
        %489 = vmatprep.subr.mxu0 0.0
        %490 = vmatpush1.msra.mxu0 %v470
        %491 = vmatprep.subr.mxu0 0.0
        %492 = vmatpush1.msra.mxu0 %v471
        %493 = vmatprep.subr.mxu0 0.0
        %494 = vmatpush1.msra.mxu0 %v472
        %495 = vmatprep.subr.mxu0 0.0
        %496 = vmatpush1.msra.mxu0 %v473
        %497 = vmatprep.subr.mxu0 0.0
        %498 = vmatpush1.msra.mxu0 %v474
        %499 = vmatprep.subr.mxu0 0.0
        %500 = vmatpush1.msra.mxu0 %v475
        %501 = vmatprep.subr.mxu0 0.0
        %502 = vmatpush1.msra.mxu0 %v476
        %503 = vmatprep.subr.mxu0 0.0
        %504 = vmatpush1.msra.mxu0 0.0
        %505 = vmatprep.subr.mxu0 0.0
        %506 = vmatpush1.msra.mxu0 0.0
        %507 = vmatprep.subr.mxu0 0.0
        %508 = vmatpush1.msra.mxu0 0.0
        %509 = vmatprep.subr.mxu0 0.0
        %510 = vmatpush1.msra.mxu0 0.0
        %511 = vmatprep.subr.mxu0 0.0
        %512 = vmatpush1.msra.mxu0 0.0
        %513 = vmatprep.subr.mxu0 0.0
        %514 = vmatpush1.msra.mxu0 0.0
        %515 = vmatprep.subr.mxu0 0.0
        %516 = vmatpush1.msra.mxu0 0.0
        %517 = vmatprep.subr.mxu0 0.0
        %518 = vmatpush1.msra.mxu0 0.0
        %519 = vmatprep.subr.mxu0 0.0
        %520 = vmatpush1.msra.mxu0 0.0
        %521 = vmatprep.subr.mxu0 0.0
        %522 = vmatpush1.msra.mxu0 0.0
        %523 = vmatprep.subr.mxu0 0.0
        %524 = vmatpush1.msra.mxu0 0.0
        %525 = vmatprep.subr.mxu0 0.0
        %526 = vmatpush1.msra.mxu0 0.0
        %527 = vmatprep.subr.mxu0 0.0
        %528 = vmatpush1.msra.mxu0 0.0
        %529 = vmatprep.subr.mxu0 0.0
        %530 = vmatpush1.msra.mxu0 0.0
        %531 = vmatprep.subr.mxu0 0.0
        %532 = vmatpush1.msra.mxu0 0.0
        %533 = vmatprep.subr.mxu0 0.0
        %534 = vmatpush1.msra.mxu0 0.0
        %535 = vmatprep.subr.mxu0 0.0
        %536 = vmatpush1.msra.mxu0 0.0
        %537 = vmatprep.subr.mxu0 0.0
        %538 = vmatpush1.msra.mxu0 0.0
        %539 = vmatprep.subr.mxu0 0.0
        %540 = vmatpush1.msra.mxu0 0.0
        %541 = vmatprep.subr.mxu0 0.0
        %542 = vmatpush1.msra.mxu0 0.0
        %543 = vmatprep.subr.mxu0 0.0
        %544 = vmatpush1.msra.mxu0 0.0
        %545 = vmatprep.subr.mxu0 0.0
        %546 = vmatpush1.msra.mxu0 0.0
        %547 = vmatprep.subr.mxu0 0.0
        %548 = vmatpush1.msra.mxu0 0.0
        %549 = vmatprep.subr.mxu0 0.0
        %550 = vmatpush1.msra.mxu0 0.0
        %551 = vmatprep.mubr.f32.mxu0 0.0
        %552 = vmatmul.mubr.f32.gmra.mrb[0].mxu0 %v483
        %v553 = vpop.f32.mrb[0].mxu0
        %v554 = vadd.f32 0.0, %v553
        %v555 = vpop.f32.mrb[0].mxu0
        %556 = vmatprep.mubr.f32.mxu0 0.0
        %557 = vmatmul.mubr.f32.gmra.mrb[0].mxu0 %v485
        %v558 = vpop.f32.mrb[0].mxu0
        %v559 = vadd.f32 0.0, %v558
        %v560 = vpop.f32.mrb[0].mxu0
        %561 = vdwg.mxu0
        %v562 = vadd.f32 %v460, %v554
        %v563 = vadd.f32 %v465, %v559
        %v564 = vld [vmem:[%s2] sm:$0x1]
        %v566 = vlaneseq
        %v567 = vshrl.u32 %v566, 7
        %v568 = vsub.s32 0, %v567
        %v569 = vrot.slane %v564, %v568
        %v571 = vadd.f32 %v562, %v569
        %v572 = vadd.f32 %v563, %v569
        %v573 = vmax.f32 %v571, 0.0
        %v574 = vmax.f32 %v572, 0.0
        %v577 = vrot.slane %v573, 7
        %v578 = vrot.slane %v574, 7
        %v579 = vsel %vm276, %v577, %v578
        %v582 = vsel %vm276, 0.0, %v577
        %v583 = vsel %vm276, %v578, 0.0
        %v584 = vld [vmem:[#allocation7] sm:$0xff]
        %v585 = vld [vmem:[#allocation7 + $0x8] sm:$0xff]
        %v586 = vld [vmem:[#allocation7 + $0x10] sm:$0xff]
        %v587 = vld [vmem:[#allocation7 + $0x18] sm:$0xff]
        %v588 = vld [vmem:[#allocation7 + $0x20] sm:$0xff]
        %v589 = vld [vmem:[#allocation7 + $0x28] sm:$0xff]
        %v590 = vld [vmem:[#allocation7 + $0x30] sm:$0xff]
        %v591 = vld [vmem:[#allocation7 + $0x38] sm:$0xff]
        %s592 = scalar_lea.vmem [#allocation7], 64
        %v593 = vld [vmem:[%s592] sm:$0xff]
        %v594 = vld [vmem:[%s592 + $0x8] sm:$0xff]
        %v595 = vld [vmem:[%s592 + $0x10] sm:$0xff]
        %v596 = vld [vmem:[%s592 + $0x18] sm:$0xff]
        %v597 = vld [vmem:[%s592 + $0x20] sm:$0xff]
        %v598 = vld [vmem:[%s592 + $0x28] sm:$0xff]
        %v599 = vld [vmem:[%s592 + $0x30] sm:$0xff]
        %v600 = vld [vmem:[%s592 + $0x38] sm:$0xff]
        %v603 = vrot.slane %v582, 1
        %v604 = vrot.slane %v579, 1
        %v605 = vsel %vm303, %v603, %v604
        %v606 = vrot.slane %v583, 1
        %v607 = vsel %vm303, %v604, %v606
        %v608 = vsel %vm309, %v605, 0
        %v610 = vsel %vm309, %v607, 0
        %612 = vmatprep.subr.mxu0 0.0
        %613 = vmatpush1.msra.mxu0 %v593
        %614 = vmatprep.subr.mxu0 0.0
        %615 = vmatpush1.msra.mxu0 %v594
        %616 = vmatprep.subr.mxu0 0.0
        %617 = vmatpush1.msra.mxu0 %v595
        %618 = vmatprep.subr.mxu0 0.0
        %619 = vmatpush1.msra.mxu0 %v596
        %620 = vmatprep.subr.mxu0 0.0
        %621 = vmatpush1.msra.mxu0 %v597
        %622 = vmatprep.subr.mxu0 0.0
        %623 = vmatpush1.msra.mxu0 %v598
        %624 = vmatprep.subr.mxu0 0.0
        %625 = vmatpush1.msra.mxu0 %v599
        %626 = vmatprep.subr.mxu0 0.0
        %627 = vmatpush1.msra.mxu0 %v600
        %628 = vmatprep.subr.mxu0 0.0
        %629 = vmatpush1.msra.mxu0 0.0
        %630 = vmatprep.subr.mxu0 0.0
        %631 = vmatpush1.msra.mxu0 0.0
        %632 = vmatprep.subr.mxu0 0.0
        %633 = vmatpush1.msra.mxu0 0.0
        %634 = vmatprep.subr.mxu0 0.0
        %635 = vmatpush1.msra.mxu0 0.0
        %636 = vmatprep.subr.mxu0 0.0
        %637 = vmatpush1.msra.mxu0 0.0
        %638 = vmatprep.subr.mxu0 0.0
        %639 = vmatpush1.msra.mxu0 0.0
        %640 = vmatprep.subr.mxu0 0.0
        %641 = vmatpush1.msra.mxu0 0.0
        %642 = vmatprep.subr.mxu0 0.0
        %643 = vmatpush1.msra.mxu0 0.0
        %644 = vmatprep.subr.mxu0 0.0
        %645 = vmatpush1.msra.mxu0 0.0
        %646 = vmatprep.subr.mxu0 0.0
        %647 = vmatpush1.msra.mxu0 0.0
        %648 = vmatprep.subr.mxu0 0.0
        %649 = vmatpush1.msra.mxu0 0.0
        %650 = vmatprep.subr.mxu0 0.0
        %651 = vmatpush1.msra.mxu0 0.0
        %652 = vmatprep.subr.mxu0 0.0
        %653 = vmatpush1.msra.mxu0 0.0
        %654 = vmatprep.subr.mxu0 0.0
        %655 = vmatpush1.msra.mxu0 0.0
        %656 = vmatprep.subr.mxu0 0.0
        %657 = vmatpush1.msra.mxu0 0.0
        %658 = vmatprep.subr.mxu0 0.0
        %659 = vmatpush1.msra.mxu0 0.0
        %660 = vmatprep.subr.mxu0 0.0
        %661 = vmatpush1.msra.mxu0 0.0
        %662 = vmatprep.subr.mxu0 0.0
        %663 = vmatpush1.msra.mxu0 0.0
        %664 = vmatprep.subr.mxu0 0.0
        %665 = vmatpush1.msra.mxu0 0.0
        %666 = vmatprep.subr.mxu0 0.0
        %667 = vmatpush1.msra.mxu0 0.0
        %668 = vmatprep.subr.mxu0 0.0
        %669 = vmatpush1.msra.mxu0 0.0
        %670 = vmatprep.subr.mxu0 0.0
        %671 = vmatpush1.msra.mxu0 0.0
        %672 = vmatprep.subr.mxu0 0.0
        %673 = vmatpush1.msra.mxu0 0.0
        %674 = vmatprep.subr.mxu0 0.0
        %675 = vmatpush1.msra.mxu0 0.0
        %676 = vmatprep.mubr.f32.mxu0 0.0
        %677 = vmatmul.mubr.f32.gmra.mrb[0].mxu0 %v608
        %v678 = vpop.f32.mrb[0].mxu0
        %v679 = vadd.f32 0.0, %v678
        %v680 = vpop.f32.mrb[0].mxu0
        %681 = vmatprep.mubr.f32.mxu0 0.0
        %682 = vmatmul.mubr.f32.gmra.mrb[0].mxu0 %v610
        %v683 = vpop.f32.mrb[0].mxu0
        %v684 = vadd.f32 0.0, %v683
        %v685 = vpop.f32.mrb[0].mxu0
        %686 = vdwg.mxu0
        %v687 = vsel %vm309, %v582, 0
        %v689 = vsel %vm309, %v579, 0
        %691 = vmatprep.subr.mxu0 0.0
        %692 = vmatpush1.msra.mxu0 %v584
        %693 = vmatprep.subr.mxu0 0.0
        %694 = vmatpush1.msra.mxu0 %v585
        %695 = vmatprep.subr.mxu0 0.0
        %696 = vmatpush1.msra.mxu0 %v586
        %697 = vmatprep.subr.mxu0 0.0
        %698 = vmatpush1.msra.mxu0 %v587
        %699 = vmatprep.subr.mxu0 0.0
        %700 = vmatpush1.msra.mxu0 %v588
        %701 = vmatprep.subr.mxu0 0.0
        %702 = vmatpush1.msra.mxu0 %v589
        %703 = vmatprep.subr.mxu0 0.0
        %704 = vmatpush1.msra.mxu0 %v590
        %705 = vmatprep.subr.mxu0 0.0
        %706 = vmatpush1.msra.mxu0 %v591
        %707 = vmatprep.subr.mxu0 0.0
        %708 = vmatpush1.msra.mxu0 0.0
        %709 = vmatprep.subr.mxu0 0.0
        %710 = vmatpush1.msra.mxu0 0.0
        %711 = vmatprep.subr.mxu0 0.0
        %712 = vmatpush1.msra.mxu0 0.0
        %713 = vmatprep.subr.mxu0 0.0
        %714 = vmatpush1.msra.mxu0 0.0
        %715 = vmatprep.subr.mxu0 0.0
        %716 = vmatpush1.msra.mxu0 0.0
        %717 = vmatprep.subr.mxu0 0.0
        %718 = vmatpush1.msra.mxu0 0.0
        %719 = vmatprep.subr.mxu0 0.0
        %720 = vmatpush1.msra.mxu0 0.0
        %721 = vmatprep.subr.mxu0 0.0
        %722 = vmatpush1.msra.mxu0 0.0
        %723 = vmatprep.subr.mxu0 0.0
        %724 = vmatpush1.msra.mxu0 0.0
        %725 = vmatprep.subr.mxu0 0.0
        %726 = vmatpush1.msra.mxu0 0.0
        %727 = vmatprep.subr.mxu0 0.0
        %728 = vmatpush1.msra.mxu0 0.0
        %729 = vmatprep.subr.mxu0 0.0
        %730 = vmatpush1.msra.mxu0 0.0
        %731 = vmatprep.subr.mxu0 0.0
        %732 = vmatpush1.msra.mxu0 0.0
        %733 = vmatprep.subr.mxu0 0.0
        %734 = vmatpush1.msra.mxu0 0.0
        %735 = vmatprep.subr.mxu0 0.0
        %736 = vmatpush1.msra.mxu0 0.0
        %737 = vmatprep.subr.mxu0 0.0
        %738 = vmatpush1.msra.mxu0 0.0
        %739 = vmatprep.subr.mxu0 0.0
        %740 = vmatpush1.msra.mxu0 0.0
        %741 = vmatprep.subr.mxu0 0.0
        %742 = vmatpush1.msra.mxu0 0.0
        %743 = vmatprep.subr.mxu0 0.0
        %744 = vmatpush1.msra.mxu0 0.0
        %745 = vmatprep.subr.mxu0 0.0
        %746 = vmatpush1.msra.mxu0 0.0
        %747 = vmatprep.subr.mxu0 0.0
        %748 = vmatpush1.msra.mxu0 0.0
        %749 = vmatprep.subr.mxu0 0.0
        %750 = vmatpush1.msra.mxu0 0.0
        %751 = vmatprep.subr.mxu0 0.0
        %752 = vmatpush1.msra.mxu0 0.0
        %753 = vmatprep.subr.mxu0 0.0
        %754 = vmatpush1.msra.mxu0 0.0
        %755 = vmatprep.mubr.f32.mxu0 0.0
        %756 = vmatmul.mubr.f32.gmra.mrb[0].mxu0 %v687
        %v757 = vpop.f32.mrb[0].mxu0
        %v758 = vadd.f32 %v679, %v757
        %v759 = vpop.f32.mrb[0].mxu0
        %760 = vmatprep.mubr.f32.mxu0 0.0
        %761 = vmatmul.mubr.f32.gmra.mrb[0].mxu0 %v689
        %v762 = vpop.f32.mrb[0].mxu0
        %v763 = vadd.f32 %v684, %v762
        %v764 = vpop.f32.mrb[0].mxu0
        %765 = vdwg.mxu0
        %s766 = scalar_lea.vmem [#allocation7], 128
        %v767 = vld [vmem:[%s766] sm:$0xff]
        %v768 = vld [vmem:[%s766 + $0x8] sm:$0xff]
        %v769 = vld [vmem:[%s766 + $0x10] sm:$0xff]
        %v770 = vld [vmem:[%s766 + $0x18] sm:$0xff]
        %v771 = vld [vmem:[%s766 + $0x20] sm:$0xff]
        %v772 = vld [vmem:[%s766 + $0x28] sm:$0xff]
        %v773 = vld [vmem:[%s766 + $0x30] sm:$0xff]
        %v774 = vld [vmem:[%s766 + $0x38] sm:$0xff]
        %v775 = vrot.slane %v582, 2
        %v776 = vrot.slane %v579, 2
        %v777 = vsel %vm477, %v775, %v776
        %v778 = vrot.slane %v583, 2
        %v779 = vsel %vm477, %v776, %v778
        %v780 = vsel %vm309, %v777, 0
        %v782 = vsel %vm309, %v779, 0
        %784 = vmatprep.subr.mxu0 0.0
        %785 = vmatpush1.msra.mxu0 %v767
        %786 = vmatprep.subr.mxu0 0.0
        %787 = vmatpush1.msra.mxu0 %v768
        %788 = vmatprep.subr.mxu0 0.0
        %789 = vmatpush1.msra.mxu0 %v769
        %790 = vmatprep.subr.mxu0 0.0
        %791 = vmatpush1.msra.mxu0 %v770
        %792 = vmatprep.subr.mxu0 0.0
        %793 = vmatpush1.msra.mxu0 %v771
        %794 = vmatprep.subr.mxu0 0.0
        %795 = vmatpush1.msra.mxu0 %v772
        %796 = vmatprep.subr.mxu0 0.0
        %797 = vmatpush1.msra.mxu0 %v773
        %798 = vmatprep.subr.mxu0 0.0
        %799 = vmatpush1.msra.mxu0 %v774
        %800 = vmatprep.subr.mxu0 0.0
        %801 = vmatpush1.msra.mxu0 0.0
        %802 = vmatprep.subr.mxu0 0.0
        %803 = vmatpush1.msra.mxu0 0.0
        %804 = vmatprep.subr.mxu0 0.0
        %805 = vmatpush1.msra.mxu0 0.0
        %806 = vmatprep.subr.mxu0 0.0
        %807 = vmatpush1.msra.mxu0 0.0
        %808 = vmatprep.subr.mxu0 0.0
        %809 = vmatpush1.msra.mxu0 0.0
        %810 = vmatprep.subr.mxu0 0.0
        %811 = vmatpush1.msra.mxu0 0.0
        %812 = vmatprep.subr.mxu0 0.0
        %813 = vmatpush1.msra.mxu0 0.0
        %814 = vmatprep.subr.mxu0 0.0
        %815 = vmatpush1.msra.mxu0 0.0
        %816 = vmatprep.subr.mxu0 0.0
        %817 = vmatpush1.msra.mxu0 0.0
        %818 = vmatprep.subr.mxu0 0.0
        %819 = vmatpush1.msra.mxu0 0.0
        %820 = vmatprep.subr.mxu0 0.0
        %821 = vmatpush1.msra.mxu0 0.0
        %822 = vmatprep.subr.mxu0 0.0
        %823 = vmatpush1.msra.mxu0 0.0
        %824 = vmatprep.subr.mxu0 0.0
        %825 = vmatpush1.msra.mxu0 0.0
        %826 = vmatprep.subr.mxu0 0.0
        %827 = vmatpush1.msra.mxu0 0.0
        %828 = vmatprep.subr.mxu0 0.0
        %829 = vmatpush1.msra.mxu0 0.0
        %830 = vmatprep.subr.mxu0 0.0
        %831 = vmatpush1.msra.mxu0 0.0
        %832 = vmatprep.subr.mxu0 0.0
        %833 = vmatpush1.msra.mxu0 0.0
        %834 = vmatprep.subr.mxu0 0.0
        %835 = vmatpush1.msra.mxu0 0.0
        %836 = vmatprep.subr.mxu0 0.0
        %837 = vmatpush1.msra.mxu0 0.0
        %838 = vmatprep.subr.mxu0 0.0
        %839 = vmatpush1.msra.mxu0 0.0
        %840 = vmatprep.subr.mxu0 0.0
        %841 = vmatpush1.msra.mxu0 0.0
        %842 = vmatprep.subr.mxu0 0.0
        %843 = vmatpush1.msra.mxu0 0.0
        %844 = vmatprep.subr.mxu0 0.0
        %845 = vmatpush1.msra.mxu0 0.0
        %846 = vmatprep.subr.mxu0 0.0
        %847 = vmatpush1.msra.mxu0 0.0
        %848 = vmatprep.mubr.f32.mxu0 0.0
        %849 = vmatmul.mubr.f32.gmra.mrb[0].mxu0 %v780
        %v850 = vpop.f32.mrb[0].mxu0
        %v851 = vadd.f32 0.0, %v850
        %v852 = vpop.f32.mrb[0].mxu0
        %853 = vmatprep.mubr.f32.mxu0 0.0
        %854 = vmatmul.mubr.f32.gmra.mrb[0].mxu0 %v782
        %v855 = vpop.f32.mrb[0].mxu0
        %v856 = vadd.f32 0.0, %v855
        %v857 = vpop.f32.mrb[0].mxu0
        %858 = vdwg.mxu0
        %v859 = vadd.f32 %v758, %v851
        %v860 = vadd.f32 %v763, %v856
        %v861 = vld [vmem:[%s4] sm:$0x1]
        %v863 = vlaneseq
        %v864 = vshrl.u32 %v863, 7
        %v865 = vsub.s32 0, %v864
        %v866 = vrot.slane %v861, %v865
        %v868 = vadd.f32 %v859, %v866
        %v869 = vadd.f32 %v860, %v866
        %v870 = vadd.f32 %v272, %v868
        %v871 = vadd.f32 %v273, %v869
        %v872 = vmax.f32 %v870, 0.0
        %v873 = vmax.f32 %v871, 0.0
        %874 = vst.msk [vmem:[%s271] sm:$0xff] %vm309, %v872
        %875 = vst.msk [vmem:[%s271 + $0x8] sm:$0xff] %vm309, %v873
        %s876 = sand.u32 %s141, 1
        %s877 = scalar_lea.sflag [#allocation4], %s876
        %s878 = sand.u32 %s141, 1
        %s879 = smul.addr %s878, 16
        %s880 = scalar_lea.vmem [#allocation8], %s879
        // Predicated region
        $region53: #{tpu_custom_call.1} parent=39 // pred_check
          %p881 = pneg %p151
        $region54: #{tpu_custom_call.1} parent=39 // pred_check_branch
          %883 = sbr.rel (%p881) target = $region56
        $region55: #{tpu_custom_call.1} parent=39 // pred_region
          %s885 = ssub.s32 256, 256
          %886 = vsyncadd %s877, %s885
          %s887 = smul.addr %s23, 2
          %s888 = smul.addr %s887, 128
          %s889 = scalar_lea.hbm %s5, %s888
          %s890 = sshll.u32 %s880, 4
          %s891 = int_to_ptr.vmem [resolvable:$true] %s890
          %896 = dma.vmem_to_hbm [thread:$0]  %s891, 256, %s889, %s877, 128, 128, 8
        $region56: #{tpu_custom_call.1} parent=39 // pred_fallthru
          _
      $region40: #{tpu_custom_call.1} parent=5 // pred_fallthru
        _
      %p897 = scmp.le.s32.totalorder 2, %s18
      // Predicated region
      $region57: #{tpu_custom_call.1} parent=5 // pred_check
        %p898 = pneg %p897
      $region58: #{tpu_custom_call.1} parent=5 // pred_check_branch
        %900 = sbr.rel (%p898) target = $region60
      $region59: #{tpu_custom_call.1} parent=5 // pred_region
        %s901 = ssub.s32 %s18, 2
        // Predicated region
        $region61: #{tpu_custom_call.1} parent=59 // pred_check
          %p902 = pneg %p157
        $region62: #{tpu_custom_call.1} parent=59 // pred_check_branch
          %904 = sbr.rel (%p902) target = $region64
        $region63: #{tpu_custom_call.1} parent=59 // pred_region
          %s905 = sand.u32 %s142, 1
          %s906 = scalar_lea.sflag [#allocation4], %s905
          %s907 = sand.u32 %s142, 1
          %s908 = smul.addr %s907, 16
          %s909 = scalar_lea.vmem [#allocation8], %s908
          %910 = dma.done %s906, 256
        $region64: #{tpu_custom_call.1} parent=59 // pred_fallthru
          _
      $region60: #{tpu_custom_call.1} parent=5 // pred_fallthru
        _
    $region6: #{tpu_custom_call.1} parent=1 // loop_footer
      %s22 = sadd.s32 1, %s18
    $region7: #{tpu_custom_call.1} parent=1 // loop_footer_branch
      %17 = sbr.rel target = $region3
    $region8: #{tpu_custom_call.1} parent=1 // loop_exit
      _
    %911 = vsyncpa [#allocation3], 1
    %s912 = scalar_lea.sflag [#allocation3], 1
    %913 = vsyncpa %s912, 1
    %914 = vsyncpa [#allocation6], 1
    %915 = vsyncpa [#allocation4], 1
    %s916 = scalar_lea.sflag [#allocation4], 1
    %917 = vsyncpa %s916, 1

</llo_original>
